<compile_context>
chip_gen: v5e
topology: v5e:2x2
jax: 0.10.0
libtpu: 0.0.40
codegen_flags: <defaults>
</compile_context>

<pallas_src>
import functools

import jax
import jax.numpy as jnp
import numpy as np
from jax import lax
from jax.experimental import pallas as pl
from jax.experimental.pallas import tpu as pltpu

LN_EPS = 1e-5


def cnn_lstm_kernel(x_ref, wc_ref, bc_ref, lnw_ref, lnb_ref,
                    wih_ref, whh_ref, bl_ref, wfc_ref, bfc_ref,
                    out_ref, pre_scr):
    Bp = out_ref.shape[0]                 # padded batch (multiple of 8)
    H = whh_ref.shape[0]                  # hidden size
    T = x_ref.shape[0] // Bp              # feat_len (time steps)

    # ---------------------------------------------------------------------
    # Hoisted, non-recurrent work: conv(+weight_norm folded) + ReLU + LN and
    # the LSTM input projection for ALL timesteps in one (T*Bp)-row MXU pass.
    # x rows are time-major: row index = t*Bp + b.
    # ---------------------------------------------------------------------
    x_all = x_ref[...]                                               # (T*Bp, K)
    z = jnp.dot(x_all, wc_ref[...],
                preferred_element_type=jnp.float32) + bc_ref[...]
    z = jnp.maximum(z, 0.0)               # ReLU; Dropout(p=0.0) == identity

    # LayerNorm over normalized shape (hidden, 1) == the hidden axis
    mu = jnp.mean(z, axis=-1, keepdims=True)
    var = jnp.mean((z - mu) ** 2, axis=-1, keepdims=True)
    z = (z - mu) * lax.rsqrt(var + LN_EPS)
    z = z * lnw_ref[...] + lnb_ref[...]

    # Input projection + (b_ih + b_hh), gate column order [i, f, o, g].
    pre_scr[...] = (jnp.dot(z, wih_ref[...],
                            preferred_element_type=jnp.float32) + bl_ref[...])

    whh = whh_ref[...]                    # loop-invariant load, hoisted

    # ---------------------------------------------------------------------
    # Serial recurrence: only h @ W_hh + VPU/EUP gate math per step.
    # ---------------------------------------------------------------------
    def step(t, carry):
        h, c = carry
        row0 = pl.multiple_of(t * Bp, Bp)
        gates = pre_scr[pl.ds(row0, Bp), :] + jnp.dot(
            h, whh, preferred_element_type=jnp.float32)              # (Bp, 4H)
        s = jax.nn.sigmoid(gates[:, :3 * H])        # i, f, o in one sigmoid
        g_g = jnp.tanh(gates[:, 3 * H:])            # g
        c_new = s[:, H:2 * H] * c + s[:, :H] * g_g
        h_new = s[:, 2 * H:] * jnp.tanh(c_new)
        return h_new, c_new

    h0 = jnp.zeros((Bp, H), jnp.float32)
    c0 = jnp.zeros((Bp, H), jnp.float32)
    h_last, _ = lax.fori_loop(0, T, step, (h0, c0), unroll=True)

    # Final FC on the last hidden state
    out_ref[...] = (jnp.dot(h_last, wfc_ref[...],
                            preferred_element_type=jnp.float32) + bfc_ref[...])


def cnn_lstm_forward(x, kparams, *, input_dim):
    (w_conv, b_conv, ln_w, ln_b, w_ih, w_hh, b_lstm, w_fc, b_fc) = kparams
    B, W, C = x.shape
    assert W % input_dim == 0, "W must be divisible by input_dim"
    feat_len = W // input_dim
    assert feat_len >= 1, "need at least one timestep"
    K = input_dim * C
    # Conv1d output length must be 1 (C == num_feat), i.e. flattened K matches.
    assert w_conv.shape[0] == K, "requires C == num_feat (conv output length 1)"
    hidden = w_hh.shape[0]
    out_dim = w_fc.shape[1]

    # Pad batch to the f32 sublane multiple of 8; compute on padded rows and
    # slice the real rows from the output.
    Bp = max(8, ((B + 7) // 8) * 8)

    # glue: (B, W, C) -> time-major rows (feat_len*Bp, K), row = t*Bp + b
    xt = (x.reshape(B, feat_len, input_dim, C)
           .transpose(1, 0, 2, 3)
           .reshape(feat_len, B, K)
           .astype(jnp.float32))
    if Bp != B:
        xt = jnp.pad(xt, ((0, 0), (0, Bp - B), (0, 0)))
    xt = xt.reshape(feat_len * Bp, K)

    grid_spec = pltpu.PrefetchScalarGridSpec(
        num_scalar_prefetch=0,
        grid=(1,),                                                    # single shot
        in_specs=[
            pl.BlockSpec((feat_len * Bp, K), lambda i: (0, 0)),       # x (all t)
            pl.BlockSpec((K, hidden), lambda i: (0, 0)),              # conv W (eff.)
            pl.BlockSpec((1, hidden), lambda i: (0, 0)),              # conv b
            pl.BlockSpec((1, hidden), lambda i: (0, 0)),              # ln w
            pl.BlockSpec((1, hidden), lambda i: (0, 0)),              # ln b
            pl.BlockSpec((hidden, 4 * hidden), lambda i: (0, 0)),     # W_ih^T [i,f,o,g]
            pl.BlockSpec((hidden, 4 * hidden), lambda i: (0, 0)),     # W_hh^T [i,f,o,g]
            pl.BlockSpec((1, 4 * hidden), lambda i: (0, 0)),          # b_ih + b_hh
            pl.BlockSpec((hidden, out_dim), lambda i: (0, 0)),        # fc W^T
            pl.BlockSpec((1, out_dim), lambda i: (0, 0)),             # fc b
        ],
        out_specs=pl.BlockSpec((Bp, out_dim), lambda i: (0, 0)),
        scratch_shapes=[
            pltpu.VMEM((feat_len * Bp, 4 * hidden), jnp.float32),     # precomputed gate inputs
        ],
    )
    out = pl.pallas_call(
        cnn_lstm_kernel,
        out_shape=jax.ShapeDtypeStruct((Bp, out_dim), jnp.float32),
        grid_spec=grid_spec,
        compiler_params=pltpu.CompilerParams(
            dimension_semantics=("arbitrary",)),
    )(xt, w_conv, b_conv, ln_w, ln_b, w_ih, w_hh, b_lstm, w_fc, b_fc)
    return out[:B]


def make_params(key, input_dim, num_feat, hidden, out_dim):
    """PyTorch-layout parameters (weight_norm already folded for the conv)."""
    ks = jax.random.split(key, 11)
    K = input_dim * num_feat
    # weight_norm(Conv1d): effective W = g * v / ||v||  (norm per out-channel)
    v = jax.random.normal(ks[0], (hidden, input_dim, num_feat), jnp.float32) * 0.1
    g = jax.random.normal(ks[1], (hidden, 1, 1), jnp.float32) * 0.1 + 1.0
    nrm = jnp.sqrt(jnp.sum(v * v, axis=(1, 2), keepdims=True))
    w_conv = (g * v / nrm).reshape(hidden, K)                         # (H, K)
    b_conv = jax.random.normal(ks[2], (hidden,), jnp.float32) * 0.1
    # LayerNorm((hidden, 1)) affine params
    ln_w = jax.random.normal(ks[3], (hidden,), jnp.float32) * 0.1 + 1.0
    ln_b = jax.random.normal(ks[4], (hidden,), jnp.float32) * 0.1
    # LSTM weights ~ normal(0, 0.02) as in _init_weights; biases small random
    w_ih = jax.random.normal(ks[5], (4 * hidden, hidden), jnp.float32) * 0.02
    w_hh = jax.random.normal(ks[6], (4 * hidden, hidden), jnp.float32) * 0.02
    b_ih = jax.random.normal(ks[7], (4 * hidden,), jnp.float32) * 0.1
    b_hh = jax.random.normal(ks[8], (4 * hidden,), jnp.float32) * 0.1
    # fc
    w_fc = jax.random.normal(ks[9], (out_dim, hidden), jnp.float32) * 0.1
    b_fc = jax.random.normal(ks[10], (out_dim,), jnp.float32) * 0.1
    return (w_conv, b_conv, ln_w, ln_b, w_ih, w_hh, b_ih, b_hh, w_fc, b_fc)


def prep_kernel_params(params, hidden):
    """Transpose / reorder PyTorch-layout params into the kernel's layout."""
    (w_conv, b_conv, ln_w, ln_b, w_ih, w_hh, b_ih, b_hh, w_fc, b_fc) = params
    H = hidden
    out_dim = w_fc.shape[0]
    # PyTorch gate order along the 4H axis is (i, f, g, o); reorder to
    # (i, f, o, g) so one sigmoid covers the first 3H lanes.
    perm = np.concatenate([np.arange(0, 2 * H),
                           np.arange(3 * H, 4 * H),
                           np.arange(2 * H, 3 * H)])
    return (w_conv.T,                                  # (K, H)
            b_conv.reshape(1, H),
            ln_w.reshape(1, H),
            ln_b.reshape(1, H),
            w_ih[perm].T,                              # (H, 4H), cols [i,f,o,g]
            w_hh[perm].T,                              # (H, 4H), cols [i,f,o,g]
            (b_ih + b_hh)[perm].reshape(1, 4 * H),
            w_fc.T,                                    # (H, out_dim)
            b_fc.reshape(1, out_dim))


def reference(x, params, input_dim, hidden):
    """Pure-JAX reference mirroring the PyTorch forward (original gate order)."""
    (w_conv, b_conv, ln_w, ln_b, w_ih, w_hh, b_ih, b_hh, w_fc, b_fc) = params
    B, W, C = x.shape
    feat_len = W // input_dim
    H = hidden
    xr = x.reshape(B, feat_len, input_dim * C).astype(jnp.float32)
    h = jnp.zeros((B, H), jnp.float32)
    c = jnp.zeros((B, H), jnp.float32)
    for t in range(feat_len):
        z = xr[:, t, :] @ w_conv.T + b_conv
        z = jnp.maximum(z, 0.0)
        mu = z.mean(-1, keepdims=True)
        var = ((z - mu) ** 2).mean(-1, keepdims=True)
        z = (z - mu) / jnp.sqrt(var + LN_EPS) * ln_w + ln_b
        gates = z @ w_ih.T + h @ w_hh.T + (b_ih + b_hh)
        i_g = jax.nn.sigmoid(gates[:, :H])
        f_g = jax.nn.sigmoid(gates[:, H:2 * H])
        g_g = jnp.tanh(gates[:, 2 * H:3 * H])
        o_g = jax.nn.sigmoid(gates[:, 3 * H:])
        c = f_g * c + i_g * g_g
        h = o_g * jnp.tanh(c)
    return h @ w_fc.T + b_fc


if __name__ == "__main__":
    B, input_dim, num_feat, hidden, out_dim, feat_len = 2, 4, 4, 32, 8, 8
    W = feat_len * input_dim          # PyTorch: feat_len = W // input_dim
    C = num_feat                      # conv output length 1 requires C == num_feat

    key = jax.random.PRNGKey(0)
    kx, kp = jax.random.split(key)
    x = jax.random.normal(kx, (B, W, C), jnp.float32)
    params = make_params(kp, input_dim, num_feat, hidden, out_dim)
    kparams = prep_kernel_params(params, hidden)

    out = cnn_lstm_forward(x, kparams, input_dim=input_dim)
    out = jax.block_until_ready(out)

    ref = reference(x, params, input_dim, hidden)
    np.testing.assert_allclose(np.asarray(out), np.asarray(ref),
                               rtol=1e-4, atol=1e-4)
    print("KERNEL_OK")
</pallas_src>

<mosaic_0001>
module attributes {stable_mosaic.version = 11 : i64} {
  func.func @cnn_lstm_kernel(%arg0: i32, %arg1: memref<64x16xf32, #tpu.memory_space<vmem>>, %arg2: memref<16x32xf32, #tpu.memory_space<vmem>>, %arg3: memref<1x32xf32, #tpu.memory_space<vmem>>, %arg4: memref<1x32xf32, #tpu.memory_space<vmem>>, %arg5: memref<1x32xf32, #tpu.memory_space<vmem>>, %arg6: memref<32x128xf32, #tpu.memory_space<vmem>>, %arg7: memref<32x128xf32, #tpu.memory_space<vmem>>, %arg8: memref<1x128xf32, #tpu.memory_space<vmem>>, %arg9: memref<32x8xf32, #tpu.memory_space<vmem>>, %arg10: memref<1x8xf32, #tpu.memory_space<vmem>>, %arg11: memref<8x8xf32, #tpu.memory_space<vmem>>, %arg12: memref<64x128xf32, #tpu.memory_space<vmem>>) attributes {dimension_semantics = [#tpu.dimension_semantics<arbitrary>], iteration_bounds = array<i64: 1>, scalar_prefetch = 0 : i64, scratch_operands = 1 : i64, tpu.core_type = #tpu.core_type<tc>, window_params = [{pipeline_mode = #tpu.pipeline_mode<synchronous>, transform_indices = @transform_0, window_bounds = array<i64: 64, 16>}, {pipeline_mode = #tpu.pipeline_mode<synchronous>, transform_indices = @transform_1, window_bounds = array<i64: 16, 32>}, {pipeline_mode = #tpu.pipeline_mode<synchronous>, transform_indices = @transform_2, window_bounds = array<i64: 1, 32>}, {pipeline_mode = #tpu.pipeline_mode<synchronous>, transform_indices = @transform_3, window_bounds = array<i64: 1, 32>}, {pipeline_mode = #tpu.pipeline_mode<synchronous>, transform_indices = @transform_4, window_bounds = array<i64: 1, 32>}, {pipeline_mode = #tpu.pipeline_mode<synchronous>, transform_indices = @transform_5, window_bounds = array<i64: 32, 128>}, {pipeline_mode = #tpu.pipeline_mode<synchronous>, transform_indices = @transform_6, window_bounds = array<i64: 32, 128>}, {pipeline_mode = #tpu.pipeline_mode<synchronous>, transform_indices = @transform_7, window_bounds = array<i64: 1, 128>}, {pipeline_mode = #tpu.pipeline_mode<synchronous>, transform_indices = @transform_8, window_bounds = array<i64: 32, 8>}, {pipeline_mode = #tpu.pipeline_mode<synchronous>, transform_indices = @transform_9, window_bounds = array<i64: 1, 8>}, {pipeline_mode = #tpu.pipeline_mode<synchronous>, transform_indices = @transform_10, window_bounds = array<i64: 8, 8>}]} {
    %c0 = arith.constant 0 : index
    %c0_0 = arith.constant 0 : index
    %0 = vector.load %arg1[%c0, %c0_0] : memref<64x16xf32, #tpu.memory_space<vmem>>, vector<64x16xf32>
    %c0_1 = arith.constant 0 : index
    %c0_2 = arith.constant 0 : index
    %1 = vector.load %arg2[%c0_1, %c0_2] : memref<16x32xf32, #tpu.memory_space<vmem>>, vector<16x32xf32>
    %cst = arith.constant dense<0.000000e+00> : vector<64x32xf32>
    %2 = tpu.matmul %0, %1, %cst {dimension_numbers = #tpu.dot_dimension_numbers<[1], [0], [0], [1], [0, 0, 1, 1], [], []>} : vector<64x16xf32>, vector<16x32xf32>, vector<64x32xf32> -> vector<64x32xf32>
    %c0_3 = arith.constant 0 : index
    %c0_4 = arith.constant 0 : index
    %3 = vector.load %arg3[%c0_3, %c0_4] : memref<1x32xf32, #tpu.memory_space<vmem>>, vector<1x32xf32>
    %4 = vector.broadcast %3 : vector<1x32xf32> to vector<64x32xf32>
    %5 = arith.addf %2, %4 : vector<64x32xf32>
    %cst_5 = arith.constant 0.000000e+00 : f32
    %6 = vector.broadcast %cst_5 : f32 to vector<64x32xf32>
    %7 = arith.maximumf %5, %6 : vector<64x32xf32>
    %cst_6 = arith.constant dense<0.000000e+00> : vector<64xf32>
    %8 = vector.multi_reduction <add>, %7, %cst_6 [1] : vector<64x32xf32> to vector<64xf32>
    %9 = vector.shape_cast %8 : vector<64xf32> to vector<64x1xf32>
    %cst_7 = arith.constant 3.200000e+01 : f32
    %10 = vector.broadcast %cst_7 : f32 to vector<64x1xf32>
    %11 = arith.divf %9, %10 : vector<64x1xf32>
    %12 = vector.broadcast %11 : vector<64x1xf32> to vector<64x32xf32>
    %13 = arith.subf %7, %12 : vector<64x32xf32>
    %14 = arith.mulf %13, %13 : vector<64x32xf32>
    %cst_8 = arith.constant dense<0.000000e+00> : vector<64xf32>
    %15 = vector.multi_reduction <add>, %14, %cst_8 [1] : vector<64x32xf32> to vector<64xf32>
    %16 = vector.shape_cast %15 : vector<64xf32> to vector<64x1xf32>
    %cst_9 = arith.constant 3.200000e+01 : f32
    %17 = vector.broadcast %cst_9 : f32 to vector<64x1xf32>
    %18 = arith.divf %16, %17 : vector<64x1xf32>
    %19 = vector.broadcast %11 : vector<64x1xf32> to vector<64x32xf32>
    %20 = arith.subf %7, %19 : vector<64x32xf32>
    %cst_10 = arith.constant 9.99999974E-6 : f32
    %21 = vector.broadcast %cst_10 : f32 to vector<64x1xf32>
    %22 = arith.addf %18, %21 : vector<64x1xf32>
    %23 = math.rsqrt %22 : vector<64x1xf32>
    %24 = vector.broadcast %23 : vector<64x1xf32> to vector<64x32xf32>
    %25 = arith.mulf %20, %24 : vector<64x32xf32>
    %c0_11 = arith.constant 0 : index
    %c0_12 = arith.constant 0 : index
    %26 = vector.load %arg4[%c0_11, %c0_12] : memref<1x32xf32, #tpu.memory_space<vmem>>, vector<1x32xf32>
    %27 = vector.broadcast %26 : vector<1x32xf32> to vector<64x32xf32>
    %28 = arith.mulf %25, %27 : vector<64x32xf32>
    %c0_13 = arith.constant 0 : index
    %c0_14 = arith.constant 0 : index
    %29 = vector.load %arg5[%c0_13, %c0_14] : memref<1x32xf32, #tpu.memory_space<vmem>>, vector<1x32xf32>
    %30 = vector.broadcast %29 : vector<1x32xf32> to vector<64x32xf32>
    %31 = arith.addf %28, %30 : vector<64x32xf32>
    %c0_15 = arith.constant 0 : index
    %c0_16 = arith.constant 0 : index
    %32 = vector.load %arg6[%c0_15, %c0_16] : memref<32x128xf32, #tpu.memory_space<vmem>>, vector<32x128xf32>
    %cst_17 = arith.constant dense<0.000000e+00> : vector<64x128xf32>
    %33 = tpu.matmul %31, %32, %cst_17 {dimension_numbers = #tpu.dot_dimension_numbers<[1], [0], [0], [1], [0, 0, 1, 1], [], []>} : vector<64x32xf32>, vector<32x128xf32>, vector<64x128xf32> -> vector<64x128xf32>
    %c0_18 = arith.constant 0 : index
    %c0_19 = arith.constant 0 : index
    %34 = vector.load %arg8[%c0_18, %c0_19] : memref<1x128xf32, #tpu.memory_space<vmem>>, vector<1x128xf32>
    %35 = vector.broadcast %34 : vector<1x128xf32> to vector<64x128xf32>
    %36 = arith.addf %33, %35 : vector<64x128xf32>
    %c0_20 = arith.constant 0 : index
    %c0_21 = arith.constant 0 : index
    %37 = vector.load %arg12[%c0_20, %c0_21] : memref<64x128xf32, #tpu.memory_space<vmem>>, vector<64x128xf32>
    tpu.vector_store %arg12[%c0_20, %c0_21], %36 {strides = array<i32>} : memref<64x128xf32, #tpu.memory_space<vmem>>, vector<64x128xf32>,
    %c0_22 = arith.constant 0 : index
    %c0_23 = arith.constant 0 : index
    %38 = vector.load %arg7[%c0_22, %c0_23] : memref<32x128xf32, #tpu.memory_space<vmem>>, vector<32x128xf32>
    %cst_24 = arith.constant 0.000000e+00 : f32
    %39 = vector.broadcast %cst_24 : f32 to vector<8x32xf32>
    %cst_25 = arith.constant 0.000000e+00 : f32
    %40 = vector.broadcast %cst_25 : f32 to vector<8x32xf32>
    %c0_i32 = arith.constant 0 : i32
    %c8_i32 = arith.constant 8 : i32
    %41 = arith.muli %c0_i32, %c8_i32 : i32
    %42 = tpu.assume_multiple %41, 8 : i32
    %43 = arith.index_cast %42 : i32 to index
    %c0_26 = arith.constant 0 : index
    %44 = vector.load %arg12[%43, %c0_26] : memref<64x128xf32, #tpu.memory_space<vmem>>, vector<8x128xf32>
    %cst_27 = arith.constant dense<0.000000e+00> : vector<8x128xf32>
    %45 = tpu.matmul %39, %38, %cst_27 {dimension_numbers = #tpu.dot_dimension_numbers<[1], [0], [0], [1], [0, 0, 1, 1], [], []>} : vector<8x32xf32>, vector<32x128xf32>, vector<8x128xf32> -> vector<8x128xf32>
    %46 = arith.addf %44, %45 : vector<8x128xf32>
    %47 = vector.extract_strided_slice %46 {offsets = [0, 0], sizes = [8, 96], strides = [1, 1]} : vector<8x128xf32> to vector<8x96xf32>
    %48 = arith.negf %47 : vector<8x96xf32>
    %49 = math.exp %48 : vector<8x96xf32>
    %cst_28 = arith.constant 1.000000e+00 : f32
    %50 = vector.broadcast %cst_28 : f32 to vector<8x96xf32>
    %51 = arith.addf %50, %49 : vector<8x96xf32>
    %52 = arith.divf %50, %51 : vector<8x96xf32>
    %53 = vector.extract_strided_slice %46 {offsets = [0, 96], sizes = [8, 32], strides = [1, 1]} : vector<8x128xf32> to vector<8x32xf32>
    %54 = math.tanh %53 : vector<8x32xf32>
    %55 = vector.extract_strided_slice %52 {offsets = [0, 32], sizes = [8, 32], strides = [1, 1]} : vector<8x96xf32> to vector<8x32xf32>
    %56 = arith.mulf %55, %40 : vector<8x32xf32>
    %57 = vector.extract_strided_slice %52 {offsets = [0, 0], sizes = [8, 32], strides = [1, 1]} : vector<8x96xf32> to vector<8x32xf32>
    %58 = arith.mulf %57, %54 : vector<8x32xf32>
    %59 = arith.addf %56, %58 : vector<8x32xf32>
    %60 = vector.extract_strided_slice %52 {offsets = [0, 64], sizes = [8, 32], strides = [1, 1]} : vector<8x96xf32> to vector<8x32xf32>
    %61 = math.tanh %59 : vector<8x32xf32>
    %62 = arith.mulf %60, %61 : vector<8x32xf32>
    %c1_i32 = arith.constant 1 : i32
    %c8_i32_29 = arith.constant 8 : i32
    %63 = arith.muli %c1_i32, %c8_i32_29 : i32
    %64 = tpu.assume_multiple %63, 8 : i32
    %65 = arith.index_cast %64 : i32 to index
    %c0_30 = arith.constant 0 : index
    %66 = vector.load %arg12[%65, %c0_30] : memref<64x128xf32, #tpu.memory_space<vmem>>, vector<8x128xf32>
    %cst_31 = arith.constant dense<0.000000e+00> : vector<8x128xf32>
    %67 = tpu.matmul %62, %38, %cst_31 {dimension_numbers = #tpu.dot_dimension_numbers<[1], [0], [0], [1], [0, 0, 1, 1], [], []>} : vector<8x32xf32>, vector<32x128xf32>, vector<8x128xf32> -> vector<8x128xf32>
    %68 = arith.addf %66, %67 : vector<8x128xf32>
    %69 = vector.extract_strided_slice %68 {offsets = [0, 0], sizes = [8, 96], strides = [1, 1]} : vector<8x128xf32> to vector<8x96xf32>
    %70 = arith.negf %69 : vector<8x96xf32>
    %71 = math.exp %70 : vector<8x96xf32>
    %cst_32 = arith.constant 1.000000e+00 : f32
    %72 = vector.broadcast %cst_32 : f32 to vector<8x96xf32>
    %73 = arith.addf %72, %71 : vector<8x96xf32>
    %74 = arith.divf %72, %73 : vector<8x96xf32>
    %75 = vector.extract_strided_slice %68 {offsets = [0, 96], sizes = [8, 32], strides = [1, 1]} : vector<8x128xf32> to vector<8x32xf32>
    %76 = math.tanh %75 : vector<8x32xf32>
    %77 = vector.extract_strided_slice %74 {offsets = [0, 32], sizes = [8, 32], strides = [1, 1]} : vector<8x96xf32> to vector<8x32xf32>
    %78 = arith.mulf %77, %59 : vector<8x32xf32>
    %79 = vector.extract_strided_slice %74 {offsets = [0, 0], sizes = [8, 32], strides = [1, 1]} : vector<8x96xf32> to vector<8x32xf32>
    %80 = arith.mulf %79, %76 : vector<8x32xf32>
    %81 = arith.addf %78, %80 : vector<8x32xf32>
    %82 = vector.extract_strided_slice %74 {offsets = [0, 64], sizes = [8, 32], strides = [1, 1]} : vector<8x96xf32> to vector<8x32xf32>
    %83 = math.tanh %81 : vector<8x32xf32>
    %84 = arith.mulf %82, %83 : vector<8x32xf32>
    %c2_i32 = arith.constant 2 : i32
    %c8_i32_33 = arith.constant 8 : i32
    %85 = arith.muli %c2_i32, %c8_i32_33 : i32
    %86 = tpu.assume_multiple %85, 8 : i32
    %87 = arith.index_cast %86 : i32 to index
    %c0_34 = arith.constant 0 : index
    %88 = vector.load %arg12[%87, %c0_34] : memref<64x128xf32, #tpu.memory_space<vmem>>, vector<8x128xf32>
    %cst_35 = arith.constant dense<0.000000e+00> : vector<8x128xf32>
    %89 = tpu.matmul %84, %38, %cst_35 {dimension_numbers = #tpu.dot_dimension_numbers<[1], [0], [0], [1], [0, 0, 1, 1], [], []>} : vector<8x32xf32>, vector<32x128xf32>, vector<8x128xf32> -> vector<8x128xf32>
    %90 = arith.addf %88, %89 : vector<8x128xf32>
    %91 = vector.extract_strided_slice %90 {offsets = [0, 0], sizes = [8, 96], strides = [1, 1]} : vector<8x128xf32> to vector<8x96xf32>
    %92 = arith.negf %91 : vector<8x96xf32>
    %93 = math.exp %92 : vector<8x96xf32>
    %cst_36 = arith.constant 1.000000e+00 : f32
    %94 = vector.broadcast %cst_36 : f32 to vector<8x96xf32>
    %95 = arith.addf %94, %93 : vector<8x96xf32>
    %96 = arith.divf %94, %95 : vector<8x96xf32>
    %97 = vector.extract_strided_slice %90 {offsets = [0, 96], sizes = [8, 32], strides = [1, 1]} : vector<8x128xf32> to vector<8x32xf32>
    %98 = math.tanh %97 : vector<8x32xf32>
    %99 = vector.extract_strided_slice %96 {offsets = [0, 32], sizes = [8, 32], strides = [1, 1]} : vector<8x96xf32> to vector<8x32xf32>
    %100 = arith.mulf %99, %81 : vector<8x32xf32>
    %101 = vector.extract_strided_slice %96 {offsets = [0, 0], sizes = [8, 32], strides = [1, 1]} : vector<8x96xf32> to vector<8x32xf32>
    %102 = arith.mulf %101, %98 : vector<8x32xf32>
    %103 = arith.addf %100, %102 : vector<8x32xf32>
    %104 = vector.extract_strided_slice %96 {offsets = [0, 64], sizes = [8, 32], strides = [1, 1]} : vector<8x96xf32> to vector<8x32xf32>
    %105 = math.tanh %103 : vector<8x32xf32>
    %106 = arith.mulf %104, %105 : vector<8x32xf32>
    %c3_i32 = arith.constant 3 : i32
    %c8_i32_37 = arith.constant 8 : i32
    %107 = arith.muli %c3_i32, %c8_i32_37 : i32
    %108 = tpu.assume_multiple %107, 8 : i32
    %109 = arith.index_cast %108 : i32 to index
    %c0_38 = arith.constant 0 : index
    %110 = vector.load %arg12[%109, %c0_38] : memref<64x128xf32, #tpu.memory_space<vmem>>, vector<8x128xf32>
    %cst_39 = arith.constant dense<0.000000e+00> : vector<8x128xf32>
    %111 = tpu.matmul %106, %38, %cst_39 {dimension_numbers = #tpu.dot_dimension_numbers<[1], [0], [0], [1], [0, 0, 1, 1], [], []>} : vector<8x32xf32>, vector<32x128xf32>, vector<8x128xf32> -> vector<8x128xf32>
    %112 = arith.addf %110, %111 : vector<8x128xf32>
    %113 = vector.extract_strided_slice %112 {offsets = [0, 0], sizes = [8, 96], strides = [1, 1]} : vector<8x128xf32> to vector<8x96xf32>
    %114 = arith.negf %113 : vector<8x96xf32>
    %115 = math.exp %114 : vector<8x96xf32>
    %cst_40 = arith.constant 1.000000e+00 : f32
    %116 = vector.broadcast %cst_40 : f32 to vector<8x96xf32>
    %117 = arith.addf %116, %115 : vector<8x96xf32>
    %118 = arith.divf %116, %117 : vector<8x96xf32>
    %119 = vector.extract_strided_slice %112 {offsets = [0, 96], sizes = [8, 32], strides = [1, 1]} : vector<8x128xf32> to vector<8x32xf32>
    %120 = math.tanh %119 : vector<8x32xf32>
    %121 = vector.extract_strided_slice %118 {offsets = [0, 32], sizes = [8, 32], strides = [1, 1]} : vector<8x96xf32> to vector<8x32xf32>
    %122 = arith.mulf %121, %103 : vector<8x32xf32>
    %123 = vector.extract_strided_slice %118 {offsets = [0, 0], sizes = [8, 32], strides = [1, 1]} : vector<8x96xf32> to vector<8x32xf32>
    %124 = arith.mulf %123, %120 : vector<8x32xf32>
    %125 = arith.addf %122, %124 : vector<8x32xf32>
    %126 = vector.extract_strided_slice %118 {offsets = [0, 64], sizes = [8, 32], strides = [1, 1]} : vector<8x96xf32> to vector<8x32xf32>
    %127 = math.tanh %125 : vector<8x32xf32>
    %128 = arith.mulf %126, %127 : vector<8x32xf32>
    %c4_i32 = arith.constant 4 : i32
    %c8_i32_41 = arith.constant 8 : i32
    %129 = arith.muli %c4_i32, %c8_i32_41 : i32
    %130 = tpu.assume_multiple %129, 8 : i32
    %131 = arith.index_cast %130 : i32 to index
    %c0_42 = arith.constant 0 : index
    %132 = vector.load %arg12[%131, %c0_42] : memref<64x128xf32, #tpu.memory_space<vmem>>, vector<8x128xf32>
    %cst_43 = arith.constant dense<0.000000e+00> : vector<8x128xf32>
    %133 = tpu.matmul %128, %38, %cst_43 {dimension_numbers = #tpu.dot_dimension_numbers<[1], [0], [0], [1], [0, 0, 1, 1], [], []>} : vector<8x32xf32>, vector<32x128xf32>, vector<8x128xf32> -> vector<8x128xf32>
    %134 = arith.addf %132, %133 : vector<8x128xf32>
    %135 = vector.extract_strided_slice %134 {offsets = [0, 0], sizes = [8, 96], strides = [1, 1]} : vector<8x128xf32> to vector<8x96xf32>
    %136 = arith.negf %135 : vector<8x96xf32>
    %137 = math.exp %136 : vector<8x96xf32>
    %cst_44 = arith.constant 1.000000e+00 : f32
    %138 = vector.broadcast %cst_44 : f32 to vector<8x96xf32>
    %139 = arith.addf %138, %137 : vector<8x96xf32>
    %140 = arith.divf %138, %139 : vector<8x96xf32>
    %141 = vector.extract_strided_slice %134 {offsets = [0, 96], sizes = [8, 32], strides = [1, 1]} : vector<8x128xf32> to vector<8x32xf32>
    %142 = math.tanh %141 : vector<8x32xf32>
    %143 = vector.extract_strided_slice %140 {offsets = [0, 32], sizes = [8, 32], strides = [1, 1]} : vector<8x96xf32> to vector<8x32xf32>
    %144 = arith.mulf %143, %125 : vector<8x32xf32>
    %145 = vector.extract_strided_slice %140 {offsets = [0, 0], sizes = [8, 32], strides = [1, 1]} : vector<8x96xf32> to vector<8x32xf32>
    %146 = arith.mulf %145, %142 : vector<8x32xf32>
    %147 = arith.addf %144, %146 : vector<8x32xf32>
    %148 = vector.extract_strided_slice %140 {offsets = [0, 64], sizes = [8, 32], strides = [1, 1]} : vector<8x96xf32> to vector<8x32xf32>
    %149 = math.tanh %147 : vector<8x32xf32>
    %150 = arith.mulf %148, %149 : vector<8x32xf32>
    %c5_i32 = arith.constant 5 : i32
    %c8_i32_45 = arith.constant 8 : i32
    %151 = arith.muli %c5_i32, %c8_i32_45 : i32
    %152 = tpu.assume_multiple %151, 8 : i32
    %153 = arith.index_cast %152 : i32 to index
    %c0_46 = arith.constant 0 : index
    %154 = vector.load %arg12[%153, %c0_46] : memref<64x128xf32, #tpu.memory_space<vmem>>, vector<8x128xf32>
    %cst_47 = arith.constant dense<0.000000e+00> : vector<8x128xf32>
    %155 = tpu.matmul %150, %38, %cst_47 {dimension_numbers = #tpu.dot_dimension_numbers<[1], [0], [0], [1], [0, 0, 1, 1], [], []>} : vector<8x32xf32>, vector<32x128xf32>, vector<8x128xf32> -> vector<8x128xf32>
    %156 = arith.addf %154, %155 : vector<8x128xf32>
    %157 = vector.extract_strided_slice %156 {offsets = [0, 0], sizes = [8, 96], strides = [1, 1]} : vector<8x128xf32> to vector<8x96xf32>
    %158 = arith.negf %157 : vector<8x96xf32>
    %159 = math.exp %158 : vector<8x96xf32>
    %cst_48 = arith.constant 1.000000e+00 : f32
    %160 = vector.broadcast %cst_48 : f32 to vector<8x96xf32>
    %161 = arith.addf %160, %159 : vector<8x96xf32>
    %162 = arith.divf %160, %161 : vector<8x96xf32>
    %163 = vector.extract_strided_slice %156 {offsets = [0, 96], sizes = [8, 32], strides = [1, 1]} : vector<8x128xf32> to vector<8x32xf32>
    %164 = math.tanh %163 : vector<8x32xf32>
    %165 = vector.extract_strided_slice %162 {offsets = [0, 32], sizes = [8, 32], strides = [1, 1]} : vector<8x96xf32> to vector<8x32xf32>
    %166 = arith.mulf %165, %147 : vector<8x32xf32>
    %167 = vector.extract_strided_slice %162 {offsets = [0, 0], sizes = [8, 32], strides = [1, 1]} : vector<8x96xf32> to vector<8x32xf32>
    %168 = arith.mulf %167, %164 : vector<8x32xf32>
    %169 = arith.addf %166, %168 : vector<8x32xf32>
    %170 = vector.extract_strided_slice %162 {offsets = [0, 64], sizes = [8, 32], strides = [1, 1]} : vector<8x96xf32> to vector<8x32xf32>
    %171 = math.tanh %169 : vector<8x32xf32>
    %172 = arith.mulf %170, %171 : vector<8x32xf32>
    %c6_i32 = arith.constant 6 : i32
    %c8_i32_49 = arith.constant 8 : i32
    %173 = arith.muli %c6_i32, %c8_i32_49 : i32
    %174 = tpu.assume_multiple %173, 8 : i32
    %175 = arith.index_cast %174 : i32 to index
    %c0_50 = arith.constant 0 : index
    %176 = vector.load %arg12[%175, %c0_50] : memref<64x128xf32, #tpu.memory_space<vmem>>, vector<8x128xf32>
    %cst_51 = arith.constant dense<0.000000e+00> : vector<8x128xf32>
    %177 = tpu.matmul %172, %38, %cst_51 {dimension_numbers = #tpu.dot_dimension_numbers<[1], [0], [0], [1], [0, 0, 1, 1], [], []>} : vector<8x32xf32>, vector<32x128xf32>, vector<8x128xf32> -> vector<8x128xf32>
    %178 = arith.addf %176, %177 : vector<8x128xf32>
    %179 = vector.extract_strided_slice %178 {offsets = [0, 0], sizes = [8, 96], strides = [1, 1]} : vector<8x128xf32> to vector<8x96xf32>
    %180 = arith.negf %179 : vector<8x96xf32>
    %181 = math.exp %180 : vector<8x96xf32>
    %cst_52 = arith.constant 1.000000e+00 : f32
    %182 = vector.broadcast %cst_52 : f32 to vector<8x96xf32>
    %183 = arith.addf %182, %181 : vector<8x96xf32>
    %184 = arith.divf %182, %183 : vector<8x96xf32>
    %185 = vector.extract_strided_slice %178 {offsets = [0, 96], sizes = [8, 32], strides = [1, 1]} : vector<8x128xf32> to vector<8x32xf32>
    %186 = math.tanh %185 : vector<8x32xf32>
    %187 = vector.extract_strided_slice %184 {offsets = [0, 32], sizes = [8, 32], strides = [1, 1]} : vector<8x96xf32> to vector<8x32xf32>
    %188 = arith.mulf %187, %169 : vector<8x32xf32>
    %189 = vector.extract_strided_slice %184 {offsets = [0, 0], sizes = [8, 32], strides = [1, 1]} : vector<8x96xf32> to vector<8x32xf32>
    %190 = arith.mulf %189, %186 : vector<8x32xf32>
    %191 = arith.addf %188, %190 : vector<8x32xf32>
    %192 = vector.extract_strided_slice %184 {offsets = [0, 64], sizes = [8, 32], strides = [1, 1]} : vector<8x96xf32> to vector<8x32xf32>
    %193 = math.tanh %191 : vector<8x32xf32>
    %194 = arith.mulf %192, %193 : vector<8x32xf32>
    %c7_i32 = arith.constant 7 : i32
    %c8_i32_53 = arith.constant 8 : i32
    %195 = arith.muli %c7_i32, %c8_i32_53 : i32
    %196 = tpu.assume_multiple %195, 8 : i32
    %197 = arith.index_cast %196 : i32 to index
    %c0_54 = arith.constant 0 : index
    %198 = vector.load %arg12[%197, %c0_54] : memref<64x128xf32, #tpu.memory_space<vmem>>, vector<8x128xf32>
    %cst_55 = arith.constant dense<0.000000e+00> : vector<8x128xf32>
    %199 = tpu.matmul %194, %38, %cst_55 {dimension_numbers = #tpu.dot_dimension_numbers<[1], [0], [0], [1], [0, 0, 1, 1], [], []>} : vector<8x32xf32>, vector<32x128xf32>, vector<8x128xf32> -> vector<8x128xf32>
    %200 = arith.addf %198, %199 : vector<8x128xf32>
    %201 = vector.extract_strided_slice %200 {offsets = [0, 0], sizes = [8, 96], strides = [1, 1]} : vector<8x128xf32> to vector<8x96xf32>
    %202 = arith.negf %201 : vector<8x96xf32>
    %203 = math.exp %202 : vector<8x96xf32>
    %cst_56 = arith.constant 1.000000e+00 : f32
    %204 = vector.broadcast %cst_56 : f32 to vector<8x96xf32>
    %205 = arith.addf %204, %203 : vector<8x96xf32>
    %206 = arith.divf %204, %205 : vector<8x96xf32>
    %207 = vector.extract_strided_slice %200 {offsets = [0, 96], sizes = [8, 32], strides = [1, 1]} : vector<8x128xf32> to vector<8x32xf32>
    %208 = math.tanh %207 : vector<8x32xf32>
    %209 = vector.extract_strided_slice %206 {offsets = [0, 32], sizes = [8, 32], strides = [1, 1]} : vector<8x96xf32> to vector<8x32xf32>
    %210 = arith.mulf %209, %191 : vector<8x32xf32>
    %211 = vector.extract_strided_slice %206 {offsets = [0, 0], sizes = [8, 32], strides = [1, 1]} : vector<8x96xf32> to vector<8x32xf32>
    %212 = arith.mulf %211, %208 : vector<8x32xf32>
    %213 = arith.addf %210, %212 : vector<8x32xf32>
    %214 = vector.extract_strided_slice %206 {offsets = [0, 64], sizes = [8, 32], strides = [1, 1]} : vector<8x96xf32> to vector<8x32xf32>
    %215 = math.tanh %213 : vector<8x32xf32>
    %216 = arith.mulf %214, %215 : vector<8x32xf32>
    %c8_i32_57 = arith.constant 8 : i32
    %c0_58 = arith.constant 0 : index
    %c0_59 = arith.constant 0 : index
    %217 = vector.load %arg9[%c0_58, %c0_59] : memref<32x8xf32, #tpu.memory_space<vmem>>, vector<32x8xf32>
    %cst_60 = arith.constant dense<0.000000e+00> : vector<8x8xf32>
    %218 = tpu.matmul %216, %217, %cst_60 {dimension_numbers = #tpu.dot_dimension_numbers<[1], [0], [0], [1], [0, 0, 1, 1], [], []>} : vector<8x32xf32>, vector<32x8xf32>, vector<8x8xf32> -> vector<8x8xf32>
    %c0_61 = arith.constant 0 : index
    %c0_62 = arith.constant 0 : index
    %219 = vector.load %arg10[%c0_61, %c0_62] : memref<1x8xf32, #tpu.memory_space<vmem>>, vector<1x8xf32>
    %220 = vector.broadcast %219 : vector<1x8xf32> to vector<8x8xf32>
    %221 = arith.addf %218, %220 : vector<8x8xf32>
    %c0_63 = arith.constant 0 : index
    %c0_64 = arith.constant 0 : index
    %222 = vector.load %arg11[%c0_63, %c0_64] : memref<8x8xf32, #tpu.memory_space<vmem>>, vector<8x8xf32>
    tpu.vector_store %arg11[%c0_63, %c0_64], %221 {strides = array<i32>} : memref<8x8xf32, #tpu.memory_space<vmem>>, vector<8x8xf32>,
    return
  }
  func.func @transform_0(%arg0: i32) -> (i32, i32) {
    %c0_i32 = arith.constant 0 : i32
    %c0_i32_0 = arith.constant 0 : i32
    %c0_i32_1 = arith.constant 0 : i32
    return %c0_i32, %c0_i32_0 : i32, i32
  }
  func.func @transform_1(%arg0: i32) -> (i32, i32) {
    %c0_i32 = arith.constant 0 : i32
    %c0_i32_0 = arith.constant 0 : i32
    %c0_i32_1 = arith.constant 0 : i32
    return %c0_i32, %c0_i32_0 : i32, i32
  }
  func.func @transform_2(%arg0: i32) -> (i32, i32) {
    %c0_i32 = arith.constant 0 : i32
    %c0_i32_0 = arith.constant 0 : i32
    %c0_i32_1 = arith.constant 0 : i32
    return %c0_i32, %c0_i32_0 : i32, i32
  }
  func.func @transform_3(%arg0: i32) -> (i32, i32) {
    %c0_i32 = arith.constant 0 : i32
    %c0_i32_0 = arith.constant 0 : i32
    %c0_i32_1 = arith.constant 0 : i32
    return %c0_i32, %c0_i32_0 : i32, i32
  }
  func.func @transform_4(%arg0: i32) -> (i32, i32) {
    %c0_i32 = arith.constant 0 : i32
    %c0_i32_0 = arith.constant 0 : i32
    %c0_i32_1 = arith.constant 0 : i32
    return %c0_i32, %c0_i32_0 : i32, i32
  }
  func.func @transform_5(%arg0: i32) -> (i32, i32) {
    %c0_i32 = arith.constant 0 : i32
    %c0_i32_0 = arith.constant 0 : i32
    %c0_i32_1 = arith.constant 0 : i32
    return %c0_i32, %c0_i32_0 : i32, i32
  }
  func.func @transform_6(%arg0: i32) -> (i32, i32) {
    %c0_i32 = arith.constant 0 : i32
    %c0_i32_0 = arith.constant 0 : i32
    %c0_i32_1 = arith.constant 0 : i32
    return %c0_i32, %c0_i32_0 : i32, i32
  }
  func.func @transform_7(%arg0: i32) -> (i32, i32) {
    %c0_i32 = arith.constant 0 : i32
    %c0_i32_0 = arith.constant 0 : i32
    %c0_i32_1 = arith.constant 0 : i32
    return %c0_i32, %c0_i32_0 : i32, i32
  }
  func.func @transform_8(%arg0: i32) -> (i32, i32) {
    %c0_i32 = arith.constant 0 : i32
    %c0_i32_0 = arith.constant 0 : i32
    %c0_i32_1 = arith.constant 0 : i32
    return %c0_i32, %c0_i32_0 : i32, i32
  }
  func.func @transform_9(%arg0: i32) -> (i32, i32) {
    %c0_i32 = arith.constant 0 : i32
    %c0_i32_0 = arith.constant 0 : i32
    %c0_i32_1 = arith.constant 0 : i32
    return %c0_i32, %c0_i32_0 : i32, i32
  }
  func.func @transform_10(%arg0: i32) -> (i32, i32) {
    %c0_i32 = arith.constant 0 : i32
    %c0_i32_0 = arith.constant 0 : i32
    %c0_i32_1 = arith.constant 0 : i32
    return %c0_i32, %c0_i32_0 : i32, i32
  }
}

</mosaic_0001>

<llo_original>
// kernel: tpu_custom_call.1
$region0: #{tpu_custom_call.1}
  #allocation0 [shape = 'u32[]', space=smem, size = 0x4, offset = 0x4, fixed_abs, tag = 'smem constant byte address 0x4 - core index']
  #allocation1 [shape = 'u32[72,128]{1,0:T(1,128)}', space=vmem, size = 0x9000, scoped, tag = 'internal scratch']
  #allocation2 [shape = 'f32[64,128]{1,0:T(8,128)}', space=vmem, size = 0x8000, scoped, tag = 'scratch operand']
  %s0 = inlined_call_operand.vmem [shape: f32[64,16], index: 0, kind: input, shape index: {}]
  %s1 = inlined_call_operand.vmem [shape: f32[16,32], index: 1, kind: input, shape index: {}]
  %s2 = inlined_call_operand.vmem [shape: f32[1,32], index: 2, kind: input, shape index: {}]
  %s3 = inlined_call_operand.vmem [shape: f32[1,32], index: 3, kind: input, shape index: {}]
  %s4 = inlined_call_operand.vmem [shape: f32[1,32], index: 4, kind: input, shape index: {}]
  %s5 = inlined_call_operand.vmem [shape: f32[32,128], index: 5, kind: input, shape index: {}]
  %s6 = inlined_call_operand.vmem [shape: f32[32,128], index: 6, kind: input, shape index: {}]
  %s7 = inlined_call_operand.vmem [shape: f32[1,128], index: 7, kind: input, shape index: {}]
  %s8 = inlined_call_operand.vmem [shape: f32[32,8], index: 8, kind: input, shape index: {}]
  %s9 = inlined_call_operand.vmem [shape: f32[1,8], index: 9, kind: input, shape index: {}]
  %s10 = inlined_call_operand.hbm [shape: f32[8,8], index: 10, kind: output, shape index: {}]
  %s11 = sld [smem:[#allocation0]]
  $region50: #{tpu_custom_call.1} parent=0
    _
  %s13 = ssub.s32 1, %s11
  %s14 = scalar_select 0, %s13, %s11
  $region1: #{tpu_custom_call.1} parent=0
    #allocation3 [shape = 'u8[4096]{0}', space=vmem, size = 0x1000, scoped, tag = 'output window, operand 0, single buffered']
    #allocation4 [shape = 's32[1]{0}', space=sflag, size = 0x4, scoped, tag = 'scoped memory for tpu_custom_call.1']
    %15 = vsyncpa [#allocation4], 0
    // Predicated region
    $region2: #{tpu_custom_call.1} parent=1 // pred_check
      _
    $region3: #{tpu_custom_call.1} parent=1 // pred_check_branch
      %17 = sbr.rel (0) target = $region5
    $region4: #{tpu_custom_call.1} parent=1 // pred_region
      _
    $region5: #{tpu_custom_call.1} parent=1 // pred_fallthru
      _
    // Predicated region
    $region6: #{tpu_custom_call.1} parent=1 // pred_check
      _
    $region7: #{tpu_custom_call.1} parent=1 // pred_check_branch
      %19 = sbr.rel (0) target = $region9
    $region8: #{tpu_custom_call.1} parent=1 // pred_region
      _
    $region9: #{tpu_custom_call.1} parent=1 // pred_fallthru
      _
    // Predicated region
    $region10: #{tpu_custom_call.1} parent=1 // pred_check
      _
    $region11: #{tpu_custom_call.1} parent=1 // pred_check_branch
      %21 = sbr.rel (0) target = $region13
    $region12: #{tpu_custom_call.1} parent=1 // pred_region
      _
    $region13: #{tpu_custom_call.1} parent=1 // pred_fallthru
      _
    // Predicated region
    $region14: #{tpu_custom_call.1} parent=1 // pred_check
      _
    $region15: #{tpu_custom_call.1} parent=1 // pred_check_branch
      %23 = sbr.rel (0) target = $region17
    $region16: #{tpu_custom_call.1} parent=1 // pred_region
      _
    $region17: #{tpu_custom_call.1} parent=1 // pred_fallthru
      _
    // Predicated region
    $region18: #{tpu_custom_call.1} parent=1 // pred_check
      _
    $region19: #{tpu_custom_call.1} parent=1 // pred_check_branch
      %25 = sbr.rel (0) target = $region21
    $region20: #{tpu_custom_call.1} parent=1 // pred_region
      _
    $region21: #{tpu_custom_call.1} parent=1 // pred_fallthru
      _
    // Predicated region
    $region22: #{tpu_custom_call.1} parent=1 // pred_check
      _
    $region23: #{tpu_custom_call.1} parent=1 // pred_check_branch
      %27 = sbr.rel (0) target = $region25
    $region24: #{tpu_custom_call.1} parent=1 // pred_region
      _
    $region25: #{tpu_custom_call.1} parent=1 // pred_fallthru
      _
    // Predicated region
    $region26: #{tpu_custom_call.1} parent=1 // pred_check
      _
    $region27: #{tpu_custom_call.1} parent=1 // pred_check_branch
      %29 = sbr.rel (0) target = $region29
    $region28: #{tpu_custom_call.1} parent=1 // pred_region
      _
    $region29: #{tpu_custom_call.1} parent=1 // pred_fallthru
      _
    // Predicated region
    $region30: #{tpu_custom_call.1} parent=1 // pred_check
      _
    $region31: #{tpu_custom_call.1} parent=1 // pred_check_branch
      %31 = sbr.rel (0) target = $region33
    $region32: #{tpu_custom_call.1} parent=1 // pred_region
      _
    $region33: #{tpu_custom_call.1} parent=1 // pred_fallthru
      _
    // Predicated region
    $region34: #{tpu_custom_call.1} parent=1 // pred_check
      _
    $region35: #{tpu_custom_call.1} parent=1 // pred_check_branch
      %33 = sbr.rel (0) target = $region37
    $region36: #{tpu_custom_call.1} parent=1 // pred_region
      _
    $region37: #{tpu_custom_call.1} parent=1 // pred_fallthru
      _
    // Predicated region
    $region38: #{tpu_custom_call.1} parent=1 // pred_check
      _
    $region39: #{tpu_custom_call.1} parent=1 // pred_check_branch
      %35 = sbr.rel (0) target = $region41
    $region40: #{tpu_custom_call.1} parent=1 // pred_region
      _
    $region41: #{tpu_custom_call.1} parent=1 // pred_fallthru
      _
    %v36 = vld [vmem:[%s0] sm:$0xff]
    %v37 = vld [vmem:[%s0 + $0x8] sm:$0xff]
    %v38 = vld [vmem:[%s0 + $0x10] sm:$0xff]
    %v39 = vld [vmem:[%s0 + $0x18] sm:$0xff]
    %v40 = vld [vmem:[%s0 + $0x20] sm:$0xff]
    %v41 = vld [vmem:[%s0 + $0x28] sm:$0xff]
    %v42 = vld [vmem:[%s0 + $0x30] sm:$0xff]
    %v43 = vld [vmem:[%s0 + $0x38] sm:$0xff]
    %v44 = vld [vmem:[%s1] sm:$0xff]
    %v45 = vld [vmem:[%s1 + $0x8] sm:$0xff]
    %v46 = vld [vmem:[%s2] sm:$0x1]
    %v48 = vperm.slane %v46, 0
    %vm50 = vcmask 130048
    %v52 = vsel %vm50, %v36, 0
    %v55 = vsel %vm50, %v37, 0
    %v58 = vsel %vm50, %v38, 0
    %v61 = vsel %vm50, %v39, 0
    %v64 = vsel %vm50, %v40, 0
    %v67 = vsel %vm50, %v41, 0
    %v70 = vsel %vm50, %v42, 0
    %v73 = vsel %vm50, %v43, 0
    %75 = vmatpush.msra.mxu0 0.0
    %76 = vmatpush.msra.mxu0 0.0
    %77 = vmatpush.msra.mxu0 0.0
    %78 = vmatpush.msra.mxu0 0.0
    %79 = vmatpush.msra.mxu0 0.0
    %80 = vmatpush.msra.mxu0 0.0
    %81 = vmatpush.msra.mxu0 0.0
    %82 = vmatpush.msra.mxu0 0.0
    %83 = vmatpush.msra.mxu0 0.0
    %84 = vmatpush.msra.mxu0 0.0
    %85 = vmatpush.msra.mxu0 0.0
    %86 = vmatpush.msra.mxu0 0.0
    %87 = vmatpush.msra.mxu0 0.0
    %88 = vmatpush.msra.mxu0 0.0
    %89 = vmatpush.msra.mxu0 %v45
    %90 = vmatpush.msra.mxu0 %v44
    %91 = vmatmul.f32.gmra.mxu0 %v52
    %v92 = vpop.f32.mrf.mxu0
    %v93 = vadd.f32 %v48, %v92
    %94 = vmatmul.f32.gmra.mxu0 %v55
    %v95 = vpop.f32.mrf.mxu0
    %v96 = vadd.f32 %v48, %v95
    %97 = vmatmul.f32.gmra.mxu0 %v58
    %v98 = vpop.f32.mrf.mxu0
    %v99 = vadd.f32 %v48, %v98
    %100 = vmatmul.f32.gmra.mxu0 %v61
    %v101 = vpop.f32.mrf.mxu0
    %v102 = vadd.f32 %v48, %v101
    %103 = vmatmul.f32.gmra.mxu0 %v64
    %v104 = vpop.f32.mrf.mxu0
    %v105 = vadd.f32 %v48, %v104
    %106 = vmatmul.f32.gmra.mxu0 %v67
    %v107 = vpop.f32.mrf.mxu0
    %v108 = vadd.f32 %v48, %v107
    %109 = vmatmul.f32.gmra.mxu0 %v70
    %v110 = vpop.f32.mrf.mxu0
    %v111 = vadd.f32 %v48, %v110
    %112 = vmatmul.f32.gmra.mxu0 %v73
    %v113 = vpop.f32.mrf.mxu0
    %v114 = vadd.f32 %v48, %v113
    %115 = vdwg.mxu0
    %v116 = vmax.f32 %v93, 0.0
    %v117 = vmax.f32 %v96, 0.0
    %v118 = vmax.f32 %v99, 0.0
    %v119 = vmax.f32 %v102, 0.0
    %v120 = vmax.f32 %v105, 0.0
    %v121 = vmax.f32 %v108, 0.0
    %v122 = vmax.f32 %v111, 0.0
    %v123 = vmax.f32 %v114, 0.0
    %vm124 = vcmask 261120
    %v125 = vsel %vm124, %v116, 0.0
    %126 = vadd.xlane.f32.xlu0 %v125
    %v127 = vpop.xlane.xlu0 %126
    %v128 = vsel %vm124, %v117, 0.0
    %129 = vadd.xlane.f32.xlu0 %v128
    %v130 = vpop.xlane.xlu0 %129
    %v131 = vsel %vm124, %v118, 0.0
    %132 = vadd.xlane.f32.xlu0 %v131
    %v133 = vpop.xlane.xlu0 %132
    %v134 = vsel %vm124, %v119, 0.0
    %135 = vadd.xlane.f32.xlu0 %v134
    %v136 = vpop.xlane.xlu0 %135
    %v137 = vsel %vm124, %v120, 0.0
    %138 = vadd.xlane.f32.xlu0 %v137
    %v139 = vpop.xlane.xlu0 %138
    %v140 = vsel %vm124, %v121, 0.0
    %141 = vadd.xlane.f32.xlu0 %v140
    %v142 = vpop.xlane.xlu0 %141
    %v143 = vsel %vm124, %v122, 0.0
    %144 = vadd.xlane.f32.xlu0 %v143
    %v145 = vpop.xlane.xlu0 %144
    %v146 = vsel %vm124, %v123, 0.0
    %147 = vadd.xlane.f32.xlu0 %v146
    %v148 = vpop.xlane.xlu0 %147
    %v149 = vrcp.pop 32.0
    %v150 = vmul.f32 32.0, %v149
    %v151 = vsub.f32 1.0, %v150
    %v152 = vmul.f32 %v149, %v151
    %v153 = vadd.f32 %v149, %v152
    %vm154 = vweird.f32 %v149
    %v155 = vsel %vm154, %v149, %v153
    %v156 = vmul.f32 %v127, %v155
    %v157 = vmul.f32 %v130, %v155
    %v158 = vmul.f32 %v133, %v155
    %v159 = vmul.f32 %v136, %v155
    %v160 = vmul.f32 %v139, %v155
    %v161 = vmul.f32 %v142, %v155
    %v162 = vmul.f32 %v145, %v155
    %v163 = vmul.f32 %v148, %v155
    %v164 = vsub.f32 %v116, %v156
    %v165 = vsub.f32 %v117, %v157
    %v166 = vsub.f32 %v118, %v158
    %v167 = vsub.f32 %v119, %v159
    %v168 = vsub.f32 %v120, %v160
    %v169 = vsub.f32 %v121, %v161
    %v170 = vsub.f32 %v122, %v162
    %v171 = vsub.f32 %v123, %v163
    %v172 = vmul.f32 %v164, %v164
    %v173 = vmul.f32 %v165, %v165
    %v174 = vmul.f32 %v166, %v166
    %v175 = vmul.f32 %v167, %v167
    %v176 = vmul.f32 %v168, %v168
    %v177 = vmul.f32 %v169, %v169
    %v178 = vmul.f32 %v170, %v170
    %v179 = vmul.f32 %v171, %v171
    %v180 = vsel %vm124, %v172, 0.0
    %181 = vadd.xlane.f32.xlu0 %v180
    %v182 = vpop.xlane.xlu0 %181
    %v183 = vsel %vm124, %v173, 0.0
    %184 = vadd.xlane.f32.xlu0 %v183
    %v185 = vpop.xlane.xlu0 %184
    %v186 = vsel %vm124, %v174, 0.0
    %187 = vadd.xlane.f32.xlu0 %v186
    %v188 = vpop.xlane.xlu0 %187
    %v189 = vsel %vm124, %v175, 0.0
    %190 = vadd.xlane.f32.xlu0 %v189
    %v191 = vpop.xlane.xlu0 %190
    %v192 = vsel %vm124, %v176, 0.0
    %193 = vadd.xlane.f32.xlu0 %v192
    %v194 = vpop.xlane.xlu0 %193
    %v195 = vsel %vm124, %v177, 0.0
    %196 = vadd.xlane.f32.xlu0 %v195
    %v197 = vpop.xlane.xlu0 %196
    %v198 = vsel %vm124, %v178, 0.0
    %199 = vadd.xlane.f32.xlu0 %v198
    %v200 = vpop.xlane.xlu0 %199
    %v201 = vsel %vm124, %v179, 0.0
    %202 = vadd.xlane.f32.xlu0 %v201
    %v203 = vpop.xlane.xlu0 %202
    %v204 = vmul.f32 %v182, %v155
    %v205 = vmul.f32 %v185, %v155
    %v206 = vmul.f32 %v188, %v155
    %v207 = vmul.f32 %v191, %v155
    %v208 = vmul.f32 %v194, %v155
    %v209 = vmul.f32 %v197, %v155
    %v210 = vmul.f32 %v200, %v155
    %v211 = vmul.f32 %v203, %v155
    %v212 = vadd.f32 %v204, 1e-05
    %v213 = vadd.f32 %v205, 1e-05
    %v214 = vadd.f32 %v206, 1e-05
    %v215 = vadd.f32 %v207, 1e-05
    %v216 = vadd.f32 %v208, 1e-05
    %v217 = vadd.f32 %v209, 1e-05
    %v218 = vadd.f32 %v210, 1e-05
    %v219 = vadd.f32 %v211, 1e-05
    %v220 = vrsqrt.pop %v212
    %v221 = vmul.f32 %v220, %v212
    %v222 = vmul.f32 %v221, %v220
    %v223 = vmul.f32 0.5, %v222
    %v224 = vsub.f32 1.5, %v223
    %v225 = vmul.f32 %v220, %v224
    %vm226 = vweird.f32 %v212
    %vm227 = vweird.f32 %v220
    %vm228 = vmor %vm226, %vm227
    %v229 = vsel %vm228, %v220, %v225
    %v230 = vrsqrt.pop %v213
    %v231 = vmul.f32 %v230, %v213
    %v232 = vmul.f32 %v231, %v230
    %v233 = vmul.f32 0.5, %v232
    %v234 = vsub.f32 1.5, %v233
    %v235 = vmul.f32 %v230, %v234
    %vm236 = vweird.f32 %v213
    %vm237 = vweird.f32 %v230
    %vm238 = vmor %vm236, %vm237
    %v239 = vsel %vm238, %v230, %v235
    %v240 = vrsqrt.pop %v214
    %v241 = vmul.f32 %v240, %v214
    %v242 = vmul.f32 %v241, %v240
    %v243 = vmul.f32 0.5, %v242
    %v244 = vsub.f32 1.5, %v243
    %v245 = vmul.f32 %v240, %v244
    %vm246 = vweird.f32 %v214
    %vm247 = vweird.f32 %v240
    %vm248 = vmor %vm246, %vm247
    %v249 = vsel %vm248, %v240, %v245
    %v250 = vrsqrt.pop %v215
    %v251 = vmul.f32 %v250, %v215
    %v252 = vmul.f32 %v251, %v250
    %v253 = vmul.f32 0.5, %v252
    %v254 = vsub.f32 1.5, %v253
    %v255 = vmul.f32 %v250, %v254
    %vm256 = vweird.f32 %v215
    %vm257 = vweird.f32 %v250
    %vm258 = vmor %vm256, %vm257
    %v259 = vsel %vm258, %v250, %v255
    %v260 = vrsqrt.pop %v216
    %v261 = vmul.f32 %v260, %v216
    %v262 = vmul.f32 %v261, %v260
    %v263 = vmul.f32 0.5, %v262
    %v264 = vsub.f32 1.5, %v263
    %v265 = vmul.f32 %v260, %v264
    %vm266 = vweird.f32 %v216
    %vm267 = vweird.f32 %v260
    %vm268 = vmor %vm266, %vm267
    %v269 = vsel %vm268, %v260, %v265
    %v270 = vrsqrt.pop %v217
    %v271 = vmul.f32 %v270, %v217
    %v272 = vmul.f32 %v271, %v270
    %v273 = vmul.f32 0.5, %v272
    %v274 = vsub.f32 1.5, %v273
    %v275 = vmul.f32 %v270, %v274
    %vm276 = vweird.f32 %v217
    %vm277 = vweird.f32 %v270
    %vm278 = vmor %vm276, %vm277
    %v279 = vsel %vm278, %v270, %v275
    %v280 = vrsqrt.pop %v218
    %v281 = vmul.f32 %v280, %v218
    %v282 = vmul.f32 %v281, %v280
    %v283 = vmul.f32 0.5, %v282
    %v284 = vsub.f32 1.5, %v283
    %v285 = vmul.f32 %v280, %v284
    %vm286 = vweird.f32 %v218
    %vm287 = vweird.f32 %v280
    %vm288 = vmor %vm286, %vm287
    %v289 = vsel %vm288, %v280, %v285
    %v290 = vrsqrt.pop %v219
    %v291 = vmul.f32 %v290, %v219
    %v292 = vmul.f32 %v291, %v290
    %v293 = vmul.f32 0.5, %v292
    %v294 = vsub.f32 1.5, %v293
    %v295 = vmul.f32 %v290, %v294
    %vm296 = vweird.f32 %v219
    %vm297 = vweird.f32 %v290
    %vm298 = vmor %vm296, %vm297
    %v299 = vsel %vm298, %v290, %v295
    %v300 = vmul.f32 %v164, %v229
    %v301 = vmul.f32 %v165, %v239
    %v302 = vmul.f32 %v166, %v249
    %v303 = vmul.f32 %v167, %v259
    %v304 = vmul.f32 %v168, %v269
    %v305 = vmul.f32 %v169, %v279
    %v306 = vmul.f32 %v170, %v289
    %v307 = vmul.f32 %v171, %v299
    %v308 = vld [vmem:[%s3] sm:$0x1]
    %v310 = vperm.slane %v308, 0
    %v312 = vmul.f32 %v300, %v310
    %v313 = vmul.f32 %v301, %v310
    %v314 = vmul.f32 %v302, %v310
    %v315 = vmul.f32 %v303, %v310
    %v316 = vmul.f32 %v304, %v310
    %v317 = vmul.f32 %v305, %v310
    %v318 = vmul.f32 %v306, %v310
    %v319 = vmul.f32 %v307, %v310
    %v320 = vld [vmem:[%s4] sm:$0x1]
    %v322 = vperm.slane %v320, 0
    %v324 = vadd.f32 %v312, %v322
    %v325 = vadd.f32 %v313, %v322
    %v326 = vadd.f32 %v314, %v322
    %v327 = vadd.f32 %v315, %v322
    %v328 = vadd.f32 %v316, %v322
    %v329 = vadd.f32 %v317, %v322
    %v330 = vadd.f32 %v318, %v322
    %v331 = vadd.f32 %v319, %v322
    %v332 = vld [vmem:[%s5] sm:$0xff]
    %v333 = vld [vmem:[%s5 + $0x8] sm:$0xff]
    %v334 = vld [vmem:[%s5 + $0x10] sm:$0xff]
    %v335 = vld [vmem:[%s5 + $0x18] sm:$0xff]
    %v336 = vld [vmem:[%s7] sm:$0x1]
    %v338 = vperm.slane %v336, 0
    %v341 = vsel %vm124, %v324, 0
    %v344 = vsel %vm124, %v325, 0
    %v347 = vsel %vm124, %v326, 0
    %v350 = vsel %vm124, %v327, 0
    %v353 = vsel %vm124, %v328, 0
    %v356 = vsel %vm124, %v329, 0
    %v359 = vsel %vm124, %v330, 0
    %v362 = vsel %vm124, %v331, 0
    %364 = vmatpush.msra.mxu0 0.0
    %365 = vmatpush.msra.mxu0 0.0
    %366 = vmatpush.msra.mxu0 0.0
    %367 = vmatpush.msra.mxu0 0.0
    %368 = vmatpush.msra.mxu0 0.0
    %369 = vmatpush.msra.mxu0 0.0
    %370 = vmatpush.msra.mxu0 0.0
    %371 = vmatpush.msra.mxu0 0.0
    %372 = vmatpush.msra.mxu0 0.0
    %373 = vmatpush.msra.mxu0 0.0
    %374 = vmatpush.msra.mxu0 0.0
    %375 = vmatpush.msra.mxu0 0.0
    %376 = vmatpush.msra.mxu0 %v335
    %377 = vmatpush.msra.mxu0 %v334
    %378 = vmatpush.msra.mxu0 %v333
    %379 = vmatpush.msra.mxu0 %v332
    %380 = vmatmul.f32.gmra.mxu0 %v341
    %v381 = vpop.f32.mrf.mxu0
    %v382 = vadd.f32 %v338, %v381
    %383 = vmatmul.f32.gmra.mxu0 %v344
    %v384 = vpop.f32.mrf.mxu0
    %v385 = vadd.f32 %v338, %v384
    %386 = vmatmul.f32.gmra.mxu0 %v347
    %v387 = vpop.f32.mrf.mxu0
    %v388 = vadd.f32 %v338, %v387
    %389 = vmatmul.f32.gmra.mxu0 %v350
    %v390 = vpop.f32.mrf.mxu0
    %v391 = vadd.f32 %v338, %v390
    %392 = vmatmul.f32.gmra.mxu0 %v353
    %v393 = vpop.f32.mrf.mxu0
    %v394 = vadd.f32 %v338, %v393
    %395 = vmatmul.f32.gmra.mxu0 %v356
    %v396 = vpop.f32.mrf.mxu0
    %v397 = vadd.f32 %v338, %v396
    %398 = vmatmul.f32.gmra.mxu0 %v359
    %v399 = vpop.f32.mrf.mxu0
    %v400 = vadd.f32 %v338, %v399
    %401 = vmatmul.f32.gmra.mxu0 %v362
    %v402 = vpop.f32.mrf.mxu0
    %v403 = vadd.f32 %v338, %v402
    %404 = vdwg.mxu0
    %405 = vst [vmem:[#allocation2] sm:$0xff] %v382
    %406 = vst [vmem:[#allocation2 + $0x8] sm:$0xff] %v385
    %407 = vst [vmem:[#allocation2 + $0x10] sm:$0xff] %v388
    %408 = vst [vmem:[#allocation2 + $0x18] sm:$0xff] %v391
    %409 = vst [vmem:[#allocation2 + $0x20] sm:$0xff] %v394
    %410 = vst [vmem:[#allocation2 + $0x28] sm:$0xff] %v397
    %411 = vst [vmem:[#allocation2 + $0x30] sm:$0xff] %v400
    %412 = vst [vmem:[#allocation2 + $0x38] sm:$0xff] %v403
    %v413 = vld [vmem:[%s6] sm:$0xff]
    %v414 = vld [vmem:[%s6 + $0x8] sm:$0xff]
    %v415 = vld [vmem:[%s6 + $0x10] sm:$0xff]
    %v416 = vld [vmem:[%s6 + $0x18] sm:$0xff]
    %v417 = vld [vmem:[#allocation2] sm:$0xff]
    %v419 = vsel %vm124, 0.0, 0
    %421 = vmatpush.msra.mxu0 0.0
    %422 = vmatpush.msra.mxu0 0.0
    %423 = vmatpush.msra.mxu0 0.0
    %424 = vmatpush.msra.mxu0 0.0
    %425 = vmatpush.msra.mxu0 0.0
    %426 = vmatpush.msra.mxu0 0.0
    %427 = vmatpush.msra.mxu0 0.0
    %428 = vmatpush.msra.mxu0 0.0
    %429 = vmatpush.msra.mxu0 0.0
    %430 = vmatpush.msra.mxu0 0.0
    %431 = vmatpush.msra.mxu0 0.0
    %432 = vmatpush.msra.mxu0 0.0
    %433 = vmatpush.msra.mxu0 %v416
    %434 = vmatpush.msra.mxu0 %v415
    %435 = vmatpush.msra.mxu0 %v414
    %436 = vmatpush.msra.mxu0 %v413
    %437 = vmatmul.f32.gmra.mxu0 %v419
    %v438 = vpop.f32.mrf.mxu0
    %v439 = vadd.f32 0.0, %v438
    %440 = vdwg.mxu0
    %v441 = vadd.f32 %v417, %v439
    %v442 = vxor.u32 %v441, 2147483648
    %v443 = vmul.f32 %v442, 1.442695
    %v444 = vpow.pop %v443
    %v445 = vadd.f32 %v444, 1.0
    %v446 = vrcp.pop %v445
    %v447 = vmul.f32 %v445, %v446
    %v448 = vsub.f32 1.0, %v447
    %v449 = vmul.f32 %v446, %v448
    %v450 = vadd.f32 %v446, %v449
    %vm451 = vweird.f32 %v445
    %vm452 = vweird.f32 %v446
    %vm453 = vmor %vm451, %vm452
    %v454 = vsel %vm453, %v446, %v450
    %v455 = vand.u32 2147483647, %v445
    %vm456 = vcmp.eq.f32.partialorder %v455, 8.507059e+37
    %v457 = vand.u32 %v445, 2147483648
    %v458 = vor.u32 1.1754944e-38, %v457
    %v459 = vsel %vm456, %v458, %v454
    %v460 = vmul.f32 1.0, %v459
    %v461 = vtanh.pop %v441
    %v462 = vmul.f32 %v460, 0.0
    %464 = vrot.lane.b32.xlu0 %v461, 32
    %v465 = vpop.permute.xlu0 %464
    %v467 = vmul.f32 %v460, %v465
    %469 = vrot.lane.b32.xlu0 %v467, 32
    %v470 = vpop.permute.xlu0 %469
    %v472 = vadd.f32 %v462, %v470
    %v473 = vtanh.pop %v472
    %475 = vrot.lane.b32.xlu0 %v473, 32
    %v476 = vpop.permute.xlu0 %475
    %v478 = vmul.f32 %v460, %v476
    %s479 = scalar_lea.vmem [#allocation2], 8
    %v480 = vld [vmem:[%s479] sm:$0xff]
    %482 = vrot.lane.b32.xlu0 %v478, 64
    %v483 = vpop.permute.xlu0 %482
    %v484 = vsel %vm124, %v483, 0
    %486 = vmatpush.msra.mxu0 0.0
    %487 = vmatpush.msra.mxu0 0.0
    %488 = vmatpush.msra.mxu0 0.0
    %489 = vmatpush.msra.mxu0 0.0
    %490 = vmatpush.msra.mxu0 0.0
    %491 = vmatpush.msra.mxu0 0.0
    %492 = vmatpush.msra.mxu0 0.0
    %493 = vmatpush.msra.mxu0 0.0
    %494 = vmatpush.msra.mxu0 0.0
    %495 = vmatpush.msra.mxu0 0.0
    %496 = vmatpush.msra.mxu0 0.0
    %497 = vmatpush.msra.mxu0 0.0
    %498 = vmatpush.msra.mxu0 %v416
    %499 = vmatpush.msra.mxu0 %v415
    %500 = vmatpush.msra.mxu0 %v414
    %501 = vmatpush.msra.mxu0 %v413
    %502 = vmatmul.f32.gmra.mxu0 %v484
    %v503 = vpop.f32.mrf.mxu0
    %v504 = vadd.f32 0.0, %v503
    %505 = vdwg.mxu0
    %v506 = vadd.f32 %v480, %v504
    %v507 = vxor.u32 %v506, 2147483648
    %v508 = vmul.f32 %v507, 1.442695
    %v509 = vpow.pop %v508
    %v510 = vadd.f32 %v509, 1.0
    %v511 = vrcp.pop %v510
    %v512 = vmul.f32 %v510, %v511
    %v513 = vsub.f32 1.0, %v512
    %v514 = vmul.f32 %v511, %v513
    %v515 = vadd.f32 %v511, %v514
    %vm516 = vweird.f32 %v510
    %vm517 = vweird.f32 %v511
    %vm518 = vmor %vm516, %vm517
    %v519 = vsel %vm518, %v511, %v515
    %v520 = vand.u32 2147483647, %v510
    %vm521 = vcmp.eq.f32.partialorder %v520, 8.507059e+37
    %v522 = vand.u32 %v510, 2147483648
    %v523 = vor.u32 1.1754944e-38, %v522
    %v524 = vsel %vm521, %v523, %v519
    %v525 = vmul.f32 1.0, %v524
    %v526 = vtanh.pop %v506
    %v527 = vmul.f32 %v525, %v472
    %529 = vrot.lane.b32.xlu0 %v526, 32
    %v530 = vpop.permute.xlu0 %529
    %v532 = vmul.f32 %v525, %v530
    %534 = vrot.lane.b32.xlu0 %v532, 32
    %v535 = vpop.permute.xlu0 %534
    %v537 = vadd.f32 %v527, %v535
    %v538 = vtanh.pop %v537
    %540 = vrot.lane.b32.xlu0 %v538, 32
    %v541 = vpop.permute.xlu0 %540
    %v543 = vmul.f32 %v525, %v541
    %s544 = scalar_lea.vmem [#allocation2], 16
    %v545 = vld [vmem:[%s544] sm:$0xff]
    %547 = vrot.lane.b32.xlu0 %v543, 64
    %v548 = vpop.permute.xlu0 %547
    %v549 = vsel %vm124, %v548, 0
    %551 = vmatpush.msra.mxu0 0.0
    %552 = vmatpush.msra.mxu0 0.0
    %553 = vmatpush.msra.mxu0 0.0
    %554 = vmatpush.msra.mxu0 0.0
    %555 = vmatpush.msra.mxu0 0.0
    %556 = vmatpush.msra.mxu0 0.0
    %557 = vmatpush.msra.mxu0 0.0
    %558 = vmatpush.msra.mxu0 0.0
    %559 = vmatpush.msra.mxu0 0.0
    %560 = vmatpush.msra.mxu0 0.0
    %561 = vmatpush.msra.mxu0 0.0
    %562 = vmatpush.msra.mxu0 0.0
    %563 = vmatpush.msra.mxu0 %v416
    %564 = vmatpush.msra.mxu0 %v415
    %565 = vmatpush.msra.mxu0 %v414
    %566 = vmatpush.msra.mxu0 %v413
    %567 = vmatmul.f32.gmra.mxu0 %v549
    %v568 = vpop.f32.mrf.mxu0
    %v569 = vadd.f32 0.0, %v568
    %570 = vdwg.mxu0
    %v571 = vadd.f32 %v545, %v569
    %v572 = vxor.u32 %v571, 2147483648
    %v573 = vmul.f32 %v572, 1.442695
    %v574 = vpow.pop %v573
    %v575 = vadd.f32 %v574, 1.0
    %v576 = vrcp.pop %v575
    %v577 = vmul.f32 %v575, %v576
    %v578 = vsub.f32 1.0, %v577
    %v579 = vmul.f32 %v576, %v578
    %v580 = vadd.f32 %v576, %v579
    %vm581 = vweird.f32 %v575
    %vm582 = vweird.f32 %v576
    %vm583 = vmor %vm581, %vm582
    %v584 = vsel %vm583, %v576, %v580
    %v585 = vand.u32 2147483647, %v575
    %vm586 = vcmp.eq.f32.partialorder %v585, 8.507059e+37
    %v587 = vand.u32 %v575, 2147483648
    %v588 = vor.u32 1.1754944e-38, %v587
    %v589 = vsel %vm586, %v588, %v584
    %v590 = vmul.f32 1.0, %v589
    %v591 = vtanh.pop %v571
    %v592 = vmul.f32 %v590, %v537
    %594 = vrot.lane.b32.xlu0 %v591, 32
    %v595 = vpop.permute.xlu0 %594
    %v597 = vmul.f32 %v590, %v595
    %599 = vrot.lane.b32.xlu0 %v597, 32
    %v600 = vpop.permute.xlu0 %599
    %v602 = vadd.f32 %v592, %v600
    %v603 = vtanh.pop %v602
    %605 = vrot.lane.b32.xlu0 %v603, 32
    %v606 = vpop.permute.xlu0 %605
    %v608 = vmul.f32 %v590, %v606
    %s609 = scalar_lea.vmem [#allocation2], 24
    %v610 = vld [vmem:[%s609] sm:$0xff]
    %612 = vrot.lane.b32.xlu0 %v608, 64
    %v613 = vpop.permute.xlu0 %612
    %v614 = vsel %vm124, %v613, 0
    %616 = vmatpush.msra.mxu0 0.0
    %617 = vmatpush.msra.mxu0 0.0
    %618 = vmatpush.msra.mxu0 0.0
    %619 = vmatpush.msra.mxu0 0.0
    %620 = vmatpush.msra.mxu0 0.0
    %621 = vmatpush.msra.mxu0 0.0
    %622 = vmatpush.msra.mxu0 0.0
    %623 = vmatpush.msra.mxu0 0.0
    %624 = vmatpush.msra.mxu0 0.0
    %625 = vmatpush.msra.mxu0 0.0
    %626 = vmatpush.msra.mxu0 0.0
    %627 = vmatpush.msra.mxu0 0.0
    %628 = vmatpush.msra.mxu0 %v416
    %629 = vmatpush.msra.mxu0 %v415
    %630 = vmatpush.msra.mxu0 %v414
    %631 = vmatpush.msra.mxu0 %v413
    %632 = vmatmul.f32.gmra.mxu0 %v614
    %v633 = vpop.f32.mrf.mxu0
    %v634 = vadd.f32 0.0, %v633
    %635 = vdwg.mxu0
    %v636 = vadd.f32 %v610, %v634
    %v637 = vxor.u32 %v636, 2147483648
    %v638 = vmul.f32 %v637, 1.442695
    %v639 = vpow.pop %v638
    %v640 = vadd.f32 %v639, 1.0
    %v641 = vrcp.pop %v640
    %v642 = vmul.f32 %v640, %v641
    %v643 = vsub.f32 1.0, %v642
    %v644 = vmul.f32 %v641, %v643
    %v645 = vadd.f32 %v641, %v644
    %vm646 = vweird.f32 %v640
    %vm647 = vweird.f32 %v641
    %vm648 = vmor %vm646, %vm647
    %v649 = vsel %vm648, %v641, %v645
    %v650 = vand.u32 2147483647, %v640
    %vm651 = vcmp.eq.f32.partialorder %v650, 8.507059e+37
    %v652 = vand.u32 %v640, 2147483648
    %v653 = vor.u32 1.1754944e-38, %v652
    %v654 = vsel %vm651, %v653, %v649
    %v655 = vmul.f32 1.0, %v654
    %v656 = vtanh.pop %v636
    %v657 = vmul.f32 %v655, %v602
    %659 = vrot.lane.b32.xlu0 %v656, 32
    %v660 = vpop.permute.xlu0 %659
    %v662 = vmul.f32 %v655, %v660
    %664 = vrot.lane.b32.xlu0 %v662, 32
    %v665 = vpop.permute.xlu0 %664
    %v667 = vadd.f32 %v657, %v665
    %v668 = vtanh.pop %v667
    %670 = vrot.lane.b32.xlu0 %v668, 32
    %v671 = vpop.permute.xlu0 %670
    %v673 = vmul.f32 %v655, %v671
    %s674 = scalar_lea.vmem [#allocation2], 32
    %v675 = vld [vmem:[%s674] sm:$0xff]
    %677 = vrot.lane.b32.xlu0 %v673, 64
    %v678 = vpop.permute.xlu0 %677
    %v679 = vsel %vm124, %v678, 0
    %681 = vmatpush.msra.mxu0 0.0
    %682 = vmatpush.msra.mxu0 0.0
    %683 = vmatpush.msra.mxu0 0.0
    %684 = vmatpush.msra.mxu0 0.0
    %685 = vmatpush.msra.mxu0 0.0
    %686 = vmatpush.msra.mxu0 0.0
    %687 = vmatpush.msra.mxu0 0.0
    %688 = vmatpush.msra.mxu0 0.0
    %689 = vmatpush.msra.mxu0 0.0
    %690 = vmatpush.msra.mxu0 0.0
    %691 = vmatpush.msra.mxu0 0.0
    %692 = vmatpush.msra.mxu0 0.0
    %693 = vmatpush.msra.mxu0 %v416
    %694 = vmatpush.msra.mxu0 %v415
    %695 = vmatpush.msra.mxu0 %v414
    %696 = vmatpush.msra.mxu0 %v413
    %697 = vmatmul.f32.gmra.mxu0 %v679
    %v698 = vpop.f32.mrf.mxu0
    %v699 = vadd.f32 0.0, %v698
    %700 = vdwg.mxu0
    %v701 = vadd.f32 %v675, %v699
    %v702 = vxor.u32 %v701, 2147483648
    %v703 = vmul.f32 %v702, 1.442695
    %v704 = vpow.pop %v703
    %v705 = vadd.f32 %v704, 1.0
    %v706 = vrcp.pop %v705
    %v707 = vmul.f32 %v705, %v706
    %v708 = vsub.f32 1.0, %v707
    %v709 = vmul.f32 %v706, %v708
    %v710 = vadd.f32 %v706, %v709
    %vm711 = vweird.f32 %v705
    %vm712 = vweird.f32 %v706
    %vm713 = vmor %vm711, %vm712
    %v714 = vsel %vm713, %v706, %v710
    %v715 = vand.u32 2147483647, %v705
    %vm716 = vcmp.eq.f32.partialorder %v715, 8.507059e+37
    %v717 = vand.u32 %v705, 2147483648
    %v718 = vor.u32 1.1754944e-38, %v717
    %v719 = vsel %vm716, %v718, %v714
    %v720 = vmul.f32 1.0, %v719
    %v721 = vtanh.pop %v701
    %v722 = vmul.f32 %v720, %v667
    %724 = vrot.lane.b32.xlu0 %v721, 32
    %v725 = vpop.permute.xlu0 %724
    %v727 = vmul.f32 %v720, %v725
    %729 = vrot.lane.b32.xlu0 %v727, 32
    %v730 = vpop.permute.xlu0 %729
    %v732 = vadd.f32 %v722, %v730
    %v733 = vtanh.pop %v732
    %735 = vrot.lane.b32.xlu0 %v733, 32
    %v736 = vpop.permute.xlu0 %735
    %v738 = vmul.f32 %v720, %v736
    %s739 = scalar_lea.vmem [#allocation2], 40
    %v740 = vld [vmem:[%s739] sm:$0xff]
    %742 = vrot.lane.b32.xlu0 %v738, 64
    %v743 = vpop.permute.xlu0 %742
    %v744 = vsel %vm124, %v743, 0
    %746 = vmatpush.msra.mxu0 0.0
    %747 = vmatpush.msra.mxu0 0.0
    %748 = vmatpush.msra.mxu0 0.0
    %749 = vmatpush.msra.mxu0 0.0
    %750 = vmatpush.msra.mxu0 0.0
    %751 = vmatpush.msra.mxu0 0.0
    %752 = vmatpush.msra.mxu0 0.0
    %753 = vmatpush.msra.mxu0 0.0
    %754 = vmatpush.msra.mxu0 0.0
    %755 = vmatpush.msra.mxu0 0.0
    %756 = vmatpush.msra.mxu0 0.0
    %757 = vmatpush.msra.mxu0 0.0
    %758 = vmatpush.msra.mxu0 %v416
    %759 = vmatpush.msra.mxu0 %v415
    %760 = vmatpush.msra.mxu0 %v414
    %761 = vmatpush.msra.mxu0 %v413
    %762 = vmatmul.f32.gmra.mxu0 %v744
    %v763 = vpop.f32.mrf.mxu0
    %v764 = vadd.f32 0.0, %v763
    %765 = vdwg.mxu0
    %v766 = vadd.f32 %v740, %v764
    %v767 = vxor.u32 %v766, 2147483648
    %v768 = vmul.f32 %v767, 1.442695
    %v769 = vpow.pop %v768
    %v770 = vadd.f32 %v769, 1.0
    %v771 = vrcp.pop %v770
    %v772 = vmul.f32 %v770, %v771
    %v773 = vsub.f32 1.0, %v772
    %v774 = vmul.f32 %v771, %v773
    %v775 = vadd.f32 %v771, %v774
    %vm776 = vweird.f32 %v770
    %vm777 = vweird.f32 %v771
    %vm778 = vmor %vm776, %vm777
    %v779 = vsel %vm778, %v771, %v775
    %v780 = vand.u32 2147483647, %v770
    %vm781 = vcmp.eq.f32.partialorder %v780, 8.507059e+37
    %v782 = vand.u32 %v770, 2147483648
    %v783 = vor.u32 1.1754944e-38, %v782
    %v784 = vsel %vm781, %v783, %v779
    %v785 = vmul.f32 1.0, %v784
    %v786 = vtanh.pop %v766
    %v787 = vmul.f32 %v785, %v732
    %789 = vrot.lane.b32.xlu0 %v786, 32
    %v790 = vpop.permute.xlu0 %789
    %v792 = vmul.f32 %v785, %v790
    %794 = vrot.lane.b32.xlu0 %v792, 32
    %v795 = vpop.permute.xlu0 %794
    %v797 = vadd.f32 %v787, %v795
    %v798 = vtanh.pop %v797
    %800 = vrot.lane.b32.xlu0 %v798, 32
    %v801 = vpop.permute.xlu0 %800
    %v803 = vmul.f32 %v785, %v801
    %s804 = scalar_lea.vmem [#allocation2], 48
    %v805 = vld [vmem:[%s804] sm:$0xff]
    %807 = vrot.lane.b32.xlu0 %v803, 64
    %v808 = vpop.permute.xlu0 %807
    %v809 = vsel %vm124, %v808, 0
    %811 = vmatpush.msra.mxu0 0.0
    %812 = vmatpush.msra.mxu0 0.0
    %813 = vmatpush.msra.mxu0 0.0
    %814 = vmatpush.msra.mxu0 0.0
    %815 = vmatpush.msra.mxu0 0.0
    %816 = vmatpush.msra.mxu0 0.0
    %817 = vmatpush.msra.mxu0 0.0
    %818 = vmatpush.msra.mxu0 0.0
    %819 = vmatpush.msra.mxu0 0.0
    %820 = vmatpush.msra.mxu0 0.0
    %821 = vmatpush.msra.mxu0 0.0
    %822 = vmatpush.msra.mxu0 0.0
    %823 = vmatpush.msra.mxu0 %v416
    %824 = vmatpush.msra.mxu0 %v415
    %825 = vmatpush.msra.mxu0 %v414
    %826 = vmatpush.msra.mxu0 %v413
    %827 = vmatmul.f32.gmra.mxu0 %v809
    %v828 = vpop.f32.mrf.mxu0
    %v829 = vadd.f32 0.0, %v828
    %830 = vdwg.mxu0
    %v831 = vadd.f32 %v805, %v829
    %v832 = vxor.u32 %v831, 2147483648
    %v833 = vmul.f32 %v832, 1.442695
    %v834 = vpow.pop %v833
    %v835 = vadd.f32 %v834, 1.0
    %v836 = vrcp.pop %v835
    %v837 = vmul.f32 %v835, %v836
    %v838 = vsub.f32 1.0, %v837
    %v839 = vmul.f32 %v836, %v838
    %v840 = vadd.f32 %v836, %v839
    %vm841 = vweird.f32 %v835
    %vm842 = vweird.f32 %v836
    %vm843 = vmor %vm841, %vm842
    %v844 = vsel %vm843, %v836, %v840
    %v845 = vand.u32 2147483647, %v835
    %vm846 = vcmp.eq.f32.partialorder %v845, 8.507059e+37
    %v847 = vand.u32 %v835, 2147483648
    %v848 = vor.u32 1.1754944e-38, %v847
    %v849 = vsel %vm846, %v848, %v844
    %v850 = vmul.f32 1.0, %v849
    %v851 = vtanh.pop %v831
    %v852 = vmul.f32 %v850, %v797
    %854 = vrot.lane.b32.xlu0 %v851, 32
    %v855 = vpop.permute.xlu0 %854
    %v857 = vmul.f32 %v850, %v855
    %859 = vrot.lane.b32.xlu0 %v857, 32
    %v860 = vpop.permute.xlu0 %859
    %v862 = vadd.f32 %v852, %v860
    %v863 = vtanh.pop %v862
    %865 = vrot.lane.b32.xlu0 %v863, 32
    %v866 = vpop.permute.xlu0 %865
    %v868 = vmul.f32 %v850, %v866
    %s869 = scalar_lea.vmem [#allocation2], 56
    %v870 = vld [vmem:[%s869] sm:$0xff]
    %872 = vrot.lane.b32.xlu0 %v868, 64
    %v873 = vpop.permute.xlu0 %872
    %v874 = vsel %vm124, %v873, 0
    %876 = vmatpush.msra.mxu0 0.0
    %877 = vmatpush.msra.mxu0 0.0
    %878 = vmatpush.msra.mxu0 0.0
    %879 = vmatpush.msra.mxu0 0.0
    %880 = vmatpush.msra.mxu0 0.0
    %881 = vmatpush.msra.mxu0 0.0
    %882 = vmatpush.msra.mxu0 0.0
    %883 = vmatpush.msra.mxu0 0.0
    %884 = vmatpush.msra.mxu0 0.0
    %885 = vmatpush.msra.mxu0 0.0
    %886 = vmatpush.msra.mxu0 0.0
    %887 = vmatpush.msra.mxu0 0.0
    %888 = vmatpush.msra.mxu0 %v416
    %889 = vmatpush.msra.mxu0 %v415
    %890 = vmatpush.msra.mxu0 %v414
    %891 = vmatpush.msra.mxu0 %v413
    %892 = vmatmul.f32.gmra.mxu0 %v874
    %v893 = vpop.f32.mrf.mxu0
    %v894 = vadd.f32 0.0, %v893
    %895 = vdwg.mxu0
    %v896 = vadd.f32 %v870, %v894
    %v897 = vxor.u32 %v896, 2147483648
    %v898 = vmul.f32 %v897, 1.442695
    %v899 = vpow.pop %v898
    %v900 = vadd.f32 %v899, 1.0
    %v901 = vrcp.pop %v900
    %v902 = vmul.f32 %v900, %v901
    %v903 = vsub.f32 1.0, %v902
    %v904 = vmul.f32 %v901, %v903
    %v905 = vadd.f32 %v901, %v904
    %vm906 = vweird.f32 %v900
    %vm907 = vweird.f32 %v901
    %vm908 = vmor %vm906, %vm907
    %v909 = vsel %vm908, %v901, %v905
    %v910 = vand.u32 2147483647, %v900
    %vm911 = vcmp.eq.f32.partialorder %v910, 8.507059e+37
    %v912 = vand.u32 %v900, 2147483648
    %v913 = vor.u32 1.1754944e-38, %v912
    %v914 = vsel %vm911, %v913, %v909
    %v915 = vmul.f32 1.0, %v914
    %v916 = vtanh.pop %v896
    %v917 = vmul.f32 %v915, %v862
    %919 = vrot.lane.b32.xlu0 %v916, 32
    %v920 = vpop.permute.xlu0 %919
    %v922 = vmul.f32 %v915, %v920
    %924 = vrot.lane.b32.xlu0 %v922, 32
    %v925 = vpop.permute.xlu0 %924
    %v927 = vadd.f32 %v917, %v925
    %v928 = vtanh.pop %v927
    %930 = vrot.lane.b32.xlu0 %v928, 32
    %v931 = vpop.permute.xlu0 %930
    %v933 = vmul.f32 %v915, %v931
    %v934 = vld [vmem:[%s8] sm:$0xff]
    %v935 = vld [vmem:[%s8 + $0x8] sm:$0xff]
    %v936 = vld [vmem:[%s8 + $0x10] sm:$0xff]
    %v937 = vld [vmem:[%s8 + $0x18] sm:$0xff]
    %v938 = vld [vmem:[%s9] sm:$0x1]
    %v940 = vperm.slane %v938, 0
    %943 = vrot.lane.b32.xlu0 %v933, 64
    %v944 = vpop.permute.xlu0 %943
    %v945 = vsel %vm124, %v944, 0
    %947 = vmatpush.msra.mxu0 0.0
    %948 = vmatpush.msra.mxu0 0.0
    %949 = vmatpush.msra.mxu0 0.0
    %950 = vmatpush.msra.mxu0 0.0
    %951 = vmatpush.msra.mxu0 0.0
    %952 = vmatpush.msra.mxu0 0.0
    %953 = vmatpush.msra.mxu0 0.0
    %954 = vmatpush.msra.mxu0 0.0
    %955 = vmatpush.msra.mxu0 0.0
    %956 = vmatpush.msra.mxu0 0.0
    %957 = vmatpush.msra.mxu0 0.0
    %958 = vmatpush.msra.mxu0 0.0
    %959 = vmatpush.msra.mxu0 %v937
    %960 = vmatpush.msra.mxu0 %v936
    %961 = vmatpush.msra.mxu0 %v935
    %962 = vmatpush.msra.mxu0 %v934
    %963 = vmatmul.f32.gmra.mxu0 %v945
    %v964 = vpop.f32.mrf.mxu0
    %v965 = vadd.f32 %v940, %v964
    %966 = vdwg.mxu0
    %vm967 = vcmask 64512
    %968 = vst.msk [vmem:[#allocation3] sm:$0xff] %vm967, %v965
    // Predicated region
    $region42: #{tpu_custom_call.1} parent=1 // pred_check
      _
    $region43: #{tpu_custom_call.1} parent=1 // pred_check_branch
      %970 = sbr.rel (0) target = $region45
    $region44: #{tpu_custom_call.1} parent=1 // pred_region
      %972 = vsyncadd [#allocation4], 0
      %s974 = sshll.u32 [#allocation3], 4
      %s975 = int_to_ptr.vmem [resolvable:$true] %s974
      %s976 = sshll.u32 %s10, 4
      %s977 = int_to_ptr.hbm [resolvable:$true] %s976
      %979 = dma.vmem_to_hbm [thread:$0]  %s975, 128, %s977, [#allocation4]
    $region45: #{tpu_custom_call.1} parent=1 // pred_fallthru
      _
    // Predicated region
    $region46: #{tpu_custom_call.1} parent=1 // pred_check
      _
    $region47: #{tpu_custom_call.1} parent=1 // pred_check_branch
      %981 = sbr.rel (0) target = $region49
    $region48: #{tpu_custom_call.1} parent=1 // pred_region
      %983 = dma.done [#allocation4], 128
    $region49: #{tpu_custom_call.1} parent=1 // pred_fallthru
      _
    %984 = vsyncpa [#allocation4], 1

</llo_original>
